<compile_context>
chip_gen: v6e
topology: v6e:2x2x1
jax: 0.10.0
libtpu: 0.0.40
codegen_flags: <defaults>
</compile_context>

<pallas_src>
from functools import partial

import jax
import jax.numpy as jnp
from jax.experimental import pallas as pl
from jax.experimental.pallas import tpu as pltpu


def _layernorm_kernel(x_ref, w_ref, b_ref, o_ref, *, eps, affine_in_io_dtype):
    # x_ref: (TR, D)   w_ref/b_ref: (1, D)   o_ref: (TR, D)
    xf = x_ref[...].astype(jnp.float32)
    mean = jnp.mean(xf, axis=-1, keepdims=True)
    c = xf - mean                                           # centered, f32
    var = jnp.mean(c * c, axis=-1, keepdims=True)           # biased variance (mean of c^2)
    inv = jax.lax.rsqrt(var + eps)                          # EUP rsqrt, (TR, 1)
    if affine_in_io_dtype:
        # Normalize in f32, then do scale/bias + store in the narrow I/O dtype
        # (2x elements per vreg on bf16-capable VPUs -> half the VALU slots/elem).
        yn = (c * inv).astype(o_ref.dtype)
        o_ref[...] = (yn * w_ref[...] + b_ref[...]).astype(o_ref.dtype)
    else:
        y = c * inv * w_ref[...].astype(jnp.float32) + b_ref[...].astype(jnp.float32)
        o_ref[...] = y.astype(o_ref.dtype)


def _vmem_capacity_bytes():
    """Physical VMEM per TensorCore; falls back to 128 MiB (v5e/v6e) if unavailable."""
    default = 128 * 1024 * 1024
    try:
        info = pltpu.get_tpu_info()
    except Exception:
        return default
    for name in ("vmem_capacity_bytes", "vmem_bytes", "vmem_size_bytes"):
        v = getattr(info, name, None)
        if v:
            return int(v)
    return default


def _pick_tile_rows(rows, D, itemsize, vmem_cap_bytes):
    """Largest sublane-aligned row tile whose FULL VMEM footprint fits the budget.

    Footprint per tile row:
      * 2x double-buffered input + 2x double-buffered output rows (HBM dtype)
      * ~3 f32 temporary rows inside the kernel body (x_f32, centered, affine result)
    Per-input-buffer bytes are additionally capped at ~4 MiB (gains flatten past that).
    """
    itemsize = max(1, int(itemsize))
    sublane = max(8, 32 // itemsize)                  # 8 rows f32, 16 bf16, 32 int8
    per_row = 4 * D * itemsize + 3 * D * 4
    footprint_budget = int(0.45 * vmem_cap_bytes)     # leave headroom under the scoped limit
    tr_budget = footprint_budget // max(1, per_row)
    tr_cap = (4 * 1024 * 1024) // max(1, D * itemsize)
    tr = min(tr_budget, tr_cap)
    tr = max(sublane, (tr // sublane) * sublane)
    if tr >= rows:
        return rows                                   # single full-extent block is allowed
    return tr


def layernorm_general(x, weight, bias, *, eps=1e-5, tile_rows=None):
    """LayerNormGeneral forward over the last dim.

    x:      (..., D)
    weight: (D,)   (ones at init)
    bias:   (D,)   (zeros at init)
    """
    orig_shape = x.shape
    D = orig_shape[-1]
    rows = 1
    for d in orig_shape[:-1]:
        rows *= d
    x2 = x.reshape(rows, D)
    w2 = weight.reshape(1, D)
    b2 = bias.reshape(1, D)

    vmem_cap = _vmem_capacity_bytes()
    if tile_rows is None:
        tr = _pick_tile_rows(rows, D, jnp.dtype(x.dtype).itemsize, vmem_cap)
    else:
        tr = min(int(tile_rows), rows)
    grid = (pl.cdiv(rows, tr),)

    # Narrow-dtype affine path only pays off where the VPU is bf16-capable; it is
    # harmless (DMA-hidden) elsewhere since this op is memory-bound below ~1.5 TB/s.
    affine_in_io_dtype = jnp.dtype(x.dtype) == jnp.dtype(jnp.bfloat16)

    out = pl.pallas_call(
        partial(_layernorm_kernel, eps=eps, affine_in_io_dtype=affine_in_io_dtype),
        out_shape=jax.ShapeDtypeStruct((rows, D), x.dtype),
        grid_spec=pltpu.PrefetchScalarGridSpec(
            num_scalar_prefetch=0,
            grid=grid,
            in_specs=[
                pl.BlockSpec((tr, D), lambda i: (i, 0)),   # x rows tile (partial tail masked)
                pl.BlockSpec((1, D), lambda i: (0, 0)),    # weight (kept resident)
                pl.BlockSpec((1, D), lambda i: (0, 0)),    # bias   (kept resident)
            ],
            out_specs=pl.BlockSpec((tr, D), lambda i: (i, 0)),
        ),
        compiler_params=pltpu.CompilerParams(
            dimension_semantics=("parallel",),             # row grid sharded across TCs
            vmem_limit_bytes=int(0.75 * vmem_cap),         # 96 MiB on v5e/v6e, 48 MiB on v7x
        ),
    )(x2, w2, b2)

    return out.reshape(orig_shape)


def _reference(x, weight, bias, eps):
    xf = x.astype(jnp.float32)
    c = xf - jnp.mean(xf, axis=-1, keepdims=True)
    s = jnp.mean(c * c, axis=-1, keepdims=True)
    return c / jnp.sqrt(s + eps) * weight.astype(jnp.float32) + bias.astype(jnp.float32)


if __name__ == "__main__":
    key = jax.random.PRNGKey(0)

    # Case 1: small lane-dense shape (D = 128), single tile.
    B, S, D = 2, 8, 128
    x1 = jax.random.normal(key, (B, S, D), dtype=jnp.float32)
    w1 = jnp.ones((D,), dtype=jnp.float32)
    b1 = jnp.zeros((D,), dtype=jnp.float32)
    y1 = jax.block_until_ready(layernorm_general(x1, w1, b1, eps=1e-5))
    assert jnp.allclose(y1, _reference(x1, w1, b1, 1e-5), atol=1e-5, rtol=1e-5), \
        "mismatch vs reference (case 1)"

    # Case 2: row count not divisible by the tile -> exercises cdiv grid + masked tail.
    x2 = jax.random.normal(jax.random.PRNGKey(1), (2, 3, 7, 128), dtype=jnp.float32)
    w2 = jnp.ones((128,), dtype=jnp.float32)
    b2 = jnp.zeros((128,), dtype=jnp.float32)
    y2 = jax.block_until_ready(layernorm_general(x2, w2, b2, eps=1e-5, tile_rows=8))
    assert jnp.allclose(y2, _reference(x2, w2, b2, 1e-5), atol=1e-5, rtol=1e-5), \
        "mismatch vs reference (case 2)"

    # Case 3: bf16 end-to-end (f32 stats + rsqrt, bf16 affine/store path).
    x3 = jax.random.normal(jax.random.PRNGKey(2), (2, 16, 256), dtype=jnp.bfloat16)
    w3 = jnp.ones((256,), dtype=jnp.bfloat16)
    b3 = jnp.zeros((256,), dtype=jnp.bfloat16)
    y3 = jax.block_until_ready(layernorm_general(x3, w3, b3, eps=1e-5))
    assert jnp.allclose(y3.astype(jnp.float32), _reference(x3, w3, b3, 1e-5),
                        atol=2e-2, rtol=2e-2), "mismatch vs reference (case 3)"

    # Case 4: small hidden dim like the module default usage (D = 32) — correct but
    # lane-sparse; fast path is D >= 128.
    x4 = jax.random.normal(jax.random.PRNGKey(3), (2, 8, 32), dtype=jnp.float32)
    w4 = jnp.ones((32,), dtype=jnp.float32)
    b4 = jnp.zeros((32,), dtype=jnp.float32)
    y4 = jax.block_until_ready(layernorm_general(x4, w4, b4, eps=1e-5))
    assert jnp.allclose(y4, _reference(x4, w4, b4, 1e-5), atol=1e-5, rtol=1e-5), \
        "mismatch vs reference (case 4)"

    print("KERNEL_OK")
</pallas_src>

<mosaic_0001>
module attributes {stable_mosaic.version = 11 : i64} {
  func.func @_layernorm_kernel(%arg0: i32, %arg1: memref<16x128xf32, #tpu.memory_space<vmem>>, %arg2: memref<1x128xf32, #tpu.memory_space<vmem>>, %arg3: memref<1x128xf32, #tpu.memory_space<vmem>>, %arg4: memref<16x128xf32, #tpu.memory_space<vmem>>) attributes {dimension_semantics = [#tpu.dimension_semantics<parallel>], iteration_bounds = array<i64: 1>, scalar_prefetch = 0 : i64, scratch_operands = 0 : i64, tpu.core_type = #tpu.core_type<tc>, window_params = [{transform_indices = @transform_0, window_bounds = array<i64: 16, 128>}, {pipeline_mode = #tpu.pipeline_mode<synchronous>, transform_indices = @transform_1, window_bounds = array<i64: 1, 128>}, {pipeline_mode = #tpu.pipeline_mode<synchronous>, transform_indices = @transform_2, window_bounds = array<i64: 1, 128>}, {transform_indices = @transform_3, window_bounds = array<i64: 16, 128>}]} {
    %c0 = arith.constant 0 : index
    %c0_0 = arith.constant 0 : index
    %0 = vector.load %arg1[%c0, %c0_0] : memref<16x128xf32, #tpu.memory_space<vmem>>, vector<16x128xf32>
    %cst = arith.constant dense<0.000000e+00> : vector<16xf32>
    %1 = vector.multi_reduction <add>, %0, %cst [1] : vector<16x128xf32> to vector<16xf32>
    %2 = vector.shape_cast %1 : vector<16xf32> to vector<16x1xf32>
    %cst_1 = arith.constant 1.280000e+02 : f32
    %3 = vector.broadcast %cst_1 : f32 to vector<16x1xf32>
    %4 = arith.divf %2, %3 : vector<16x1xf32>
    %5 = vector.broadcast %4 : vector<16x1xf32> to vector<16x128xf32>
    %6 = arith.subf %0, %5 : vector<16x128xf32>
    %7 = arith.mulf %6, %6 : vector<16x128xf32>
    %cst_2 = arith.constant dense<0.000000e+00> : vector<16xf32>
    %8 = vector.multi_reduction <add>, %7, %cst_2 [1] : vector<16x128xf32> to vector<16xf32>
    %9 = vector.shape_cast %8 : vector<16xf32> to vector<16x1xf32>
    %cst_3 = arith.constant 1.280000e+02 : f32
    %10 = vector.broadcast %cst_3 : f32 to vector<16x1xf32>
    %11 = arith.divf %9, %10 : vector<16x1xf32>
    %cst_4 = arith.constant 9.99999974E-6 : f32
    %12 = vector.broadcast %cst_4 : f32 to vector<16x1xf32>
    %13 = arith.addf %11, %12 : vector<16x1xf32>
    %14 = math.rsqrt %13 : vector<16x1xf32>
    %15 = vector.broadcast %14 : vector<16x1xf32> to vector<16x128xf32>
    %16 = arith.mulf %6, %15 : vector<16x128xf32>
    %c0_5 = arith.constant 0 : index
    %c0_6 = arith.constant 0 : index
    %17 = vector.load %arg2[%c0_5, %c0_6] : memref<1x128xf32, #tpu.memory_space<vmem>>, vector<1x128xf32>
    %18 = vector.broadcast %17 : vector<1x128xf32> to vector<16x128xf32>
    %19 = arith.mulf %16, %18 : vector<16x128xf32>
    %c0_7 = arith.constant 0 : index
    %c0_8 = arith.constant 0 : index
    %20 = vector.load %arg3[%c0_7, %c0_8] : memref<1x128xf32, #tpu.memory_space<vmem>>, vector<1x128xf32>
    %21 = vector.broadcast %20 : vector<1x128xf32> to vector<16x128xf32>
    %22 = arith.addf %19, %21 : vector<16x128xf32>
    %c0_9 = arith.constant 0 : index
    %c0_10 = arith.constant 0 : index
    %23 = vector.load %arg4[%c0_9, %c0_10] : memref<16x128xf32, #tpu.memory_space<vmem>>, vector<16x128xf32>
    tpu.vector_store %arg4[%c0_9, %c0_10], %22 {strides = array<i32>} : memref<16x128xf32, #tpu.memory_space<vmem>>, vector<16x128xf32>,
    return
  }
  func.func @transform_0(%arg0: i32) -> (i32, i32) {
    %c0_i32 = arith.constant 0 : i32
    %c0_i32_0 = arith.constant 0 : i32
    return %arg0, %c0_i32 : i32, i32
  }
  func.func @transform_1(%arg0: i32) -> (i32, i32) {
    %c0_i32 = arith.constant 0 : i32
    %c0_i32_0 = arith.constant 0 : i32
    %c0_i32_1 = arith.constant 0 : i32
    return %c0_i32, %c0_i32_0 : i32, i32
  }
  func.func @transform_2(%arg0: i32) -> (i32, i32) {
    %c0_i32 = arith.constant 0 : i32
    %c0_i32_0 = arith.constant 0 : i32
    %c0_i32_1 = arith.constant 0 : i32
    return %c0_i32, %c0_i32_0 : i32, i32
  }
  func.func @transform_3(%arg0: i32) -> (i32, i32) {
    %c0_i32 = arith.constant 0 : i32
    %c0_i32_0 = arith.constant 0 : i32
    return %arg0, %c0_i32 : i32, i32
  }
}

</mosaic_0001>

<llo_original>
// kernel: tpu_custom_call.1
$region0: #{tpu_custom_call.1}
  #allocation0 [shape = 'u32[]', space=smem, size = 0x4, offset = 0x4, fixed_abs, tag = 'smem constant byte address 0x4 - core index']
  #allocation1 [shape = 'u32[144,128]{1,0:T(1,128)}', space=vmem, size = 0x12000, scoped, tag = 'internal scratch']
  %s0 = inlined_call_operand.hbm [shape: f32[16,128], index: 0, kind: input, shape index: {}]
  %s1 = inlined_call_operand.vmem [shape: f32[1,128], index: 1, kind: input, shape index: {}]
  %s2 = inlined_call_operand.vmem [shape: f32[1,128], index: 2, kind: input, shape index: {}]
  %s3 = inlined_call_operand.hbm [shape: f32[16,128], index: 3, kind: output, shape index: {}]
  %s4 = sld [smem:[#allocation0]]
  $region26: #{tpu_custom_call.1} parent=0
    _
  %s6 = ssub.s32 1, %s4
  %s7 = scalar_select 0, %s6, %s4
  $region1: #{tpu_custom_call.1} parent=0
    #allocation2 [shape = 'u8[8192]{0}', space=vmem, size = 0x2000, scoped, tag = 'input window, operand 0, single buffered']
    #allocation3 [shape = 's32[1]{0}', space=sflag, size = 0x4, scoped, tag = 'scoped memory for tpu_custom_call.1']
    #allocation4 [shape = 's32[1]{0}', space=sflag, size = 0x4, scoped, tag = 'scoped memory for tpu_custom_call.1']
    #allocation5 [shape = 'u8[8192]{0}', space=vmem, size = 0x2000, scoped, tag = 'output window, operand 0, single buffered']
    %8 = vsyncpa [#allocation3], 0
    %9 = vsyncpa [#allocation4], 0
    // Predicated region
    $region2: #{tpu_custom_call.1} parent=1 // pred_check
      _
    $region3: #{tpu_custom_call.1} parent=1 // pred_check_branch
      %11 = sbr.rel (0) target = $region5
    $region4: #{tpu_custom_call.1} parent=1 // pred_region
      %s13 = ssub.s32 256, 256
      %14 = vsyncadd [#allocation3], %s13
      %s15 = sshll.u32 [#allocation2], 4
      %s16 = int_to_ptr.vmem [resolvable:$true] %s15
      %21 = dma.hbm_to_vmem [thread:$0]  %s0, 256, %s16, [#allocation3], 128, 128, 8
    $region5: #{tpu_custom_call.1} parent=1 // pred_fallthru
      _
    // Predicated region
    $region6: #{tpu_custom_call.1} parent=1 // pred_check
      _
    $region7: #{tpu_custom_call.1} parent=1 // pred_check_branch
      %23 = sbr.rel (0) target = $region9
    $region8: #{tpu_custom_call.1} parent=1 // pred_region
      _
    $region9: #{tpu_custom_call.1} parent=1 // pred_fallthru
      _
    // Predicated region
    $region10: #{tpu_custom_call.1} parent=1 // pred_check
      _
    $region11: #{tpu_custom_call.1} parent=1 // pred_check_branch
      %25 = sbr.rel (0) target = $region13
    $region12: #{tpu_custom_call.1} parent=1 // pred_region
      _
    $region13: #{tpu_custom_call.1} parent=1 // pred_fallthru
      _
    // Predicated region
    $region14: #{tpu_custom_call.1} parent=1 // pred_check
      _
    $region15: #{tpu_custom_call.1} parent=1 // pred_check_branch
      %27 = sbr.rel (0) target = $region17
    $region16: #{tpu_custom_call.1} parent=1 // pred_region
      %28 = dma.done [#allocation3], 256
    $region17: #{tpu_custom_call.1} parent=1 // pred_fallthru
      _
    %v29 = vld [vmem:[#allocation2] sm:$0xff]
    %v30 = vld [vmem:[#allocation2 + $0x8] sm:$0xff]
    %31 = vadd.xlane.f32.xlu0 %v29
    %v32 = vpop.xlane.xlu0 %31
    %33 = vadd.xlane.f32.xlu0 %v30
    %v34 = vpop.xlane.xlu0 %33
    %v35 = vrcp.pop 128.0
    %v36 = vmul.f32 %v32, %v35
    %v37 = vmul.f32 %v34, %v35
    %v38 = vsub.f32 %v29, %v36
    %v39 = vsub.f32 %v30, %v37
    %v40 = vmul.f32 %v38, %v38
    %v41 = vmul.f32 %v39, %v39
    %42 = vadd.xlane.f32.xlu0 %v40
    %v43 = vpop.xlane.xlu0 %42
    %44 = vadd.xlane.f32.xlu0 %v41
    %v45 = vpop.xlane.xlu0 %44
    %v46 = vmul.f32 %v43, %v35
    %v47 = vmul.f32 %v45, %v35
    %v48 = vadd.f32 %v46, 1e-05
    %v49 = vadd.f32 %v47, 1e-05
    %v50 = vrsqrt.pop %v48
    %v51 = vrsqrt.pop %v49
    %v52 = vmul.f32 %v38, %v50
    %v53 = vmul.f32 %v39, %v51
    %v54 = vld [vmem:[%s1] sm:$0x1]
    %v56 = vlaneseq
    %v57 = vshrl.u32 %v56, 7
    %v58 = vsub.s32 0, %v57
    %v59 = vrot.slane %v54, %v58
    %v61 = vmul.f32 %v52, %v59
    %v62 = vmul.f32 %v53, %v59
    %v63 = vld [vmem:[%s2] sm:$0x1]
    %v65 = vlaneseq
    %v66 = vshrl.u32 %v65, 7
    %v67 = vsub.s32 0, %v66
    %v68 = vrot.slane %v63, %v67
    %v70 = vadd.f32 %v61, %v68
    %v71 = vadd.f32 %v62, %v68
    %72 = vst [vmem:[#allocation5] sm:$0xff] %v70
    %73 = vst [vmem:[#allocation5 + $0x8] sm:$0xff] %v71
    // Predicated region
    $region18: #{tpu_custom_call.1} parent=1 // pred_check
      _
    $region19: #{tpu_custom_call.1} parent=1 // pred_check_branch
      %75 = sbr.rel (0) target = $region21
    $region20: #{tpu_custom_call.1} parent=1 // pred_region
      %s77 = ssub.s32 256, 256
      %78 = vsyncadd [#allocation4], %s77
      %s79 = sshll.u32 [#allocation5], 4
      %s80 = int_to_ptr.vmem [resolvable:$true] %s79
      %85 = dma.vmem_to_hbm [thread:$0]  %s80, 256, %s3, [#allocation4], 128, 128, 8
    $region21: #{tpu_custom_call.1} parent=1 // pred_fallthru
      _
    // Predicated region
    $region22: #{tpu_custom_call.1} parent=1 // pred_check
      _
    $region23: #{tpu_custom_call.1} parent=1 // pred_check_branch
      %87 = sbr.rel (0) target = $region25
    $region24: #{tpu_custom_call.1} parent=1 // pred_region
      %88 = dma.done [#allocation4], 256
    $region25: #{tpu_custom_call.1} parent=1 // pred_fallthru
      _
    %89 = vsyncpa [#allocation3], 1
    %90 = vsyncpa [#allocation4], 1

</llo_original>
